<compile_context>
chip_gen: v7x
topology: tpu7x:2x2x1
jax: 0.10.0
libtpu: 0.0.40
codegen_flags: <defaults>
</compile_context>

<pallas_src>
import jax
import jax.numpy as jnp
from jax import lax
from jax.experimental import pallas as pl
from jax.experimental.pallas import tpu as pltpu


# ------------------- stage 1: x-projection kernel (parallel) -----------------


def xproj_kernel(xpad_ref, band_ref, bias_ref, out_ref):
    """One (t, b) image: 3x3 SAME conv of x with the x-part weights of all three
    gates, biases folded into the accumulator init.  Everything is W*C lane-packed;
    the W shift is encoded in the block-banded weight, the H shift via the H-padded
    input rows."""
    hp2, _ = xpad_ref.shape
    h = hp2 - 2
    n_out = out_ref.shape[-1]
    acc = jnp.broadcast_to(bias_ref[...], (h, n_out)).astype(jnp.float32)
    for dy in range(3):                                   # static: 3 row taps
        acc = acc + jnp.dot(xpad_ref[dy:dy + h, :], band_ref[dy],
                            preferred_element_type=jnp.float32)
    out_ref[...] = acc.astype(out_ref.dtype)


# ---------------- stage 2: recurrent kernel (sequential over T) --------------


def convgru_kernel(xp_ref, h0_ref, band_ru_ref, band_o_ref, out_ref,
                   h_ref, hpad_ref):
    t = pl.program_id(1)
    H, WC = h_ref.shape                                   # H, W*Ch (lane-packed)

    @pl.when(t == 0)
    def _init():
        # Fresh carry for this batch element (re-runs for every b, so the
        # "parallel" b axis is safe: each core re-inits its own slice).
        hpad_ref[...] = jnp.zeros(hpad_ref.shape, jnp.float32)
        h0 = h0_ref[...].astype(jnp.float32)
        h_ref[...] = h0
        hpad_ref[1:H + 1, :] = h0

    h_prev = h_ref[...]                                   # (H, WC)
    xp = xp_ref[...].astype(jnp.float32)                  # (H, 3*WC), packed [r|u|o]

    def band_conv(taps, band_ref, acc):
        for dy in range(3):
            acc = acc + jnp.dot(taps[dy], band_ref[dy],
                                preferred_element_type=jnp.float32)
        return acc

    # Read & update gates fused along Cout: one (H,WC)@(WC,2WC) matmul per row tap.
    # The dy==1 tap equals the interior (= h_prev), so reuse the value we already
    # have instead of a sublane-offset re-load.
    taps_h = (hpad_ref[0:H, :], h_prev, hpad_ref[2:H + 2, :])
    acc_ru = band_conv(taps_h, band_ru_ref, xp[:, :2 * WC])
    read_gate = jax.nn.sigmoid(acc_ru[:, :WC])            # 128-aligned lane split
    update_gate = jax.nn.sigmoid(acc_ru[:, WC:])

    # Output-gate conv on concat([x, read_gate * h]); x part already lives in xp.
    gated = read_gate * h_prev
    hpad_ref[1:H + 1, :] = gated
    taps_g = (hpad_ref[0:H, :], gated, hpad_ref[2:H + 2, :])
    c = jnp.maximum(band_conv(taps_g, band_o_ref, xp[:, 2 * WC:]), 0.0)

    new_h = update_gate * h_prev + (1.0 - update_gate) * c
    h_ref[...] = new_h
    hpad_ref[1:H + 1, :] = new_h
    out_ref[...] = new_h.astype(out_ref.dtype)


# ------------------------------ wrapper ---------------------------------------


def _band_from_hwio(w_hwio, W):
    """(3,3,Cin,Cout) HWIO 3x3 weights -> (3, W*Cin, W*Cout) block-banded matrices:
    band[dy, wi*Cin+ci, wo*Cout+co] = w[dy, wi-wo+1, ci, co] (0 outside the band),
    so one SAME-conv output row is  out_row(h) = sum_dy packed_row(h+dy-1) @ band[dy].
    The W edge handling ("SAME" zero padding) falls out of the band structure."""
    _, _, cin, cout = w_hwio.shape
    wi = jnp.arange(W)[:, None]
    wo = jnp.arange(W)[None, :]
    dx = wi - wo + 1                                      # (W, W)
    valid = ((dx >= 0) & (dx <= 2)).astype(w_hwio.dtype)
    taps = w_hwio[:, jnp.clip(dx, 0, 2)] * valid[None, :, :, None, None]
    return jnp.transpose(taps, (0, 1, 3, 2, 4)).reshape(3, W * cin, W * cout)


def convgru_pallas(x, h0, params):
    """x: (T,B,H,W,Cx), h0: (B,H,W,Ch),
    params: ((wr,br),(wu,bu),(wo,bo)) with w in HWIO (3,3,Cx+Ch,Ch)."""
    T, B, H, W, Cx = x.shape
    Ch = h0.shape[-1]
    (wr, br), (wu, bu), (wo, bo) = params
    WCx, WCh = W * Cx, W * Ch

    # Split each conv weight into its x-channel / hidden-channel part (so PyTorch's
    # channel concat becomes a sum of two contributions) and build lane-packed
    # block-banded matrices.  Read/update gate weights are fused along Cout.
    band_x = jnp.concatenate(
        [_band_from_hwio(w[:, :, :Cx, :], W) for w in (wr, wu, wo)], axis=-1)
    band_ru_h = jnp.concatenate(
        [_band_from_hwio(w[:, :, Cx:, :], W) for w in (wr, wu)], axis=-1)
    band_o_h = _band_from_hwio(wo[:, :, Cx:, :], W)
    bias = jnp.concatenate([jnp.tile(b, W) for b in (br, bu, bo)]).reshape(1, 3 * WCh)

    # ---- stage 1: h-independent x projections for all gates, fully parallel ----
    xp_in = jnp.pad(x.reshape(T * B, H, WCx), ((0, 0), (1, 1), (0, 0)))
    xproj = pl.pallas_call(
        xproj_kernel,
        out_shape=jax.ShapeDtypeStruct((T * B, H, 3 * WCh), jnp.float32),
        grid_spec=pltpu.PrefetchScalarGridSpec(
            num_scalar_prefetch=0,
            grid=(T * B,),
            in_specs=[
                pl.BlockSpec((None, H + 2, WCx), lambda i: (i, 0, 0)),
                pl.BlockSpec((3, WCx, 3 * WCh), lambda i: (0, 0, 0)),
                pl.BlockSpec((1, 3 * WCh), lambda i: (0, 0)),
            ],
            out_specs=pl.BlockSpec((None, H, 3 * WCh), lambda i: (i, 0, 0)),
        ),
        compiler_params=pltpu.CompilerParams(dimension_semantics=("parallel",)),
    )(xp_in, band_x, bias).reshape(T, B, H, 3 * WCh)

    # ---- stage 2: sequential recurrence; hidden carry lives in VMEM scratch ----
    out = pl.pallas_call(
        convgru_kernel,
        out_shape=jax.ShapeDtypeStruct((T, B, H, WCh), x.dtype),
        grid_spec=pltpu.PrefetchScalarGridSpec(
            num_scalar_prefetch=0,
            grid=(B, T),                  # b: parallel (v7x 2nd TC), t: sequential
            in_specs=[
                pl.BlockSpec((None, None, H, 3 * WCh), lambda b, t: (t, b, 0, 0)),
                pl.BlockSpec((None, H, WCh), lambda b, t: (b, 0, 0)),
                pl.BlockSpec((3, WCh, 2 * WCh), lambda b, t: (0, 0, 0)),
                pl.BlockSpec((3, WCh, WCh), lambda b, t: (0, 0, 0)),
            ],
            out_specs=pl.BlockSpec((None, None, H, WCh), lambda b, t: (t, b, 0, 0)),
            scratch_shapes=[
                pltpu.VMEM((H, WCh), jnp.float32),        # hidden-state carry
                pltpu.VMEM((H + 2, WCh), jnp.float32),    # H-halo'd hidden buffer
            ],
        ),
        compiler_params=pltpu.CompilerParams(
            dimension_semantics=("parallel", "arbitrary")),
    )(xproj, h0.reshape(B, H, WCh), band_ru_h, band_o_h)

    return out.reshape(T, B, H, W, Ch)


# ------------------------ parameter setup (plain JAX glue) --------------------


def init_conv(key, cin, cout, k=3):
    # PyTorch Conv2d-style deterministic init (uniform +-1/sqrt(fan_in)), OIHW.
    kw, kb = jax.random.split(key)
    fan_in = cin * k * k
    bound = 1.0 / jnp.sqrt(jnp.float32(fan_in))
    w = jax.random.uniform(kw, (cout, cin, k, k), jnp.float32, -bound, bound)
    b = jax.random.uniform(kb, (cout,), jnp.float32, -bound, bound)
    return w, b


def spectral_normalize(w_oihw, eps, n_iter=50):
    # Deterministic spectral norm: W / sigma_max, sigma via power iteration.
    # TODO(synk): PyTorch's spectral_norm keeps a persistent random `u` and does 1
    # power iteration per forward; here sigma is computed once (converged), which
    # is deterministic but not bit-identical to torch's running estimate.
    co = w_oihw.shape[0]
    m = w_oihw.reshape(co, -1)
    u0 = jnp.ones((co,), jnp.float32) / jnp.sqrt(jnp.float32(co))
    v0 = jnp.zeros((m.shape[1],), jnp.float32)

    def body(_, carry):
        u, _ = carry
        v = m.T @ u
        v = v / (jnp.linalg.norm(v) + eps)
        u = m @ v
        u = u / (jnp.linalg.norm(u) + eps)
        return (u, v)

    u, v = lax.fori_loop(0, n_iter, body, (u0, v0))
    sigma = u @ (m @ v)
    return w_oihw / sigma


# ------------------------------ pure-JAX reference ----------------------------


def convgru_ref(x, h0, params_full):
    (wr, br), (wu, bu), (wo, bo) = params_full            # HWIO weights, full Cin

    def conv(a, w, b):
        y = lax.conv_general_dilated(
            a, w, (1, 1), "SAME",
            dimension_numbers=("NHWC", "HWIO", "NHWC"),
            precision=lax.Precision.HIGHEST)
        return y + b.reshape(1, 1, 1, -1)

    def cell(h, xt):
        xh = jnp.concatenate([xt, h], axis=-1)
        r = jax.nn.sigmoid(conv(xh, wr, br))
        u = jax.nn.sigmoid(conv(xh, wu, bu))
        gi = jnp.concatenate([xt, r * h], axis=-1)
        c = jax.nn.relu(conv(gi, wo, bo))
        out = u * h + (1.0 - u) * c
        return out, out

    _, ys = lax.scan(cell, h0, x)
    return ys


# --------------------------------- main ----------------------------------------


if __name__ == "__main__":
    T, B, H, W = 4, 2, 16, 16
    Cx, Ch = 8, 8              # input_channels = Cx + Ch = 16, output_channels = 8
    sn_eps = 1e-4

    key = jax.random.PRNGKey(0)
    k_x, k_h, k_r, k_u, k_o = jax.random.split(key, 5)

    x = jax.random.normal(k_x, (T, B, H, W, Cx), jnp.float32)
    # PyTorch's forward would crash on hidden_state=None inside the cell's concat,
    # so (as in DGMR usage) the initial hidden state is provided explicitly.
    h0 = jax.random.normal(k_h, (B, H, W, Ch), jnp.float32)

    cin = Cx + Ch
    wr_oihw, br_ = init_conv(k_r, cin, Ch)
    wu_oihw, bu_ = init_conv(k_u, cin, Ch)
    wo_oihw, bo_ = init_conv(k_o, cin, Ch)

    def to_hwio(w_oihw):
        return jnp.transpose(spectral_normalize(w_oihw, sn_eps), (2, 3, 1, 0))

    wr, wu, wo = to_hwio(wr_oihw), to_hwio(wu_oihw), to_hwio(wo_oihw)
    params = ((wr, br_), (wu, bu_), (wo, bo_))

    out = jax.block_until_ready(convgru_pallas(x, h0, params))
    ref = jax.block_until_ready(convgru_ref(x, h0, params))

    assert out.shape == (T, B, H, W, Ch)
    # Tolerance slightly relaxed vs. the Precision.HIGHEST reference because the
    # banded-matmul formulation sums contributions in a different order.
    err = float(jnp.max(jnp.abs(out - ref)))
    if not err < 2e-3:
        raise AssertionError(f"Pallas ConvGRU mismatch vs reference: max abs err = {err}")
    print("KERNEL_OK")
</pallas_src>

<mosaic_0001>
module attributes {stable_mosaic.version = 11 : i64} {
  func.func @xproj_kernel(%arg0: i32, %arg1: memref<1x18x128xf32, #tpu.memory_space<vmem>>, %arg2: memref<3x128x384xf32, #tpu.memory_space<vmem>>, %arg3: memref<1x384xf32, #tpu.memory_space<vmem>>, %arg4: memref<1x16x384xf32, #tpu.memory_space<vmem>>) attributes {dimension_semantics = [#tpu.dimension_semantics<parallel>], iteration_bounds = array<i64: 8>, scalar_prefetch = 0 : i64, scratch_operands = 0 : i64, tpu.core_type = #tpu.core_type<tc>, window_params = [{transform_indices = @transform_0, window_bounds = array<i64: 1, 18, 128>}, {pipeline_mode = #tpu.pipeline_mode<synchronous>, transform_indices = @transform_1, window_bounds = array<i64: 3, 128, 384>}, {pipeline_mode = #tpu.pipeline_mode<synchronous>, transform_indices = @transform_2, window_bounds = array<i64: 1, 384>}, {transform_indices = @transform_3, window_bounds = array<i64: 1, 16, 384>}]} {
    %c0 = arith.constant 0 : index
    %c0_0 = arith.constant 0 : index
    %0 = vector.load %arg3[%c0, %c0_0] : memref<1x384xf32, #tpu.memory_space<vmem>>, vector<1x384xf32>
    %1 = vector.shape_cast %0 : vector<1x384xf32> to vector<1x384xf32>
    %2 = vector.broadcast %1 : vector<1x384xf32> to vector<16x384xf32>
    %c0_1 = arith.constant 0 : index
    %c0_2 = arith.constant 0 : index
    %c0_3 = arith.constant 0 : index
    %3 = vector.load %arg1[%c0_1, %c0_2, %c0_3] : memref<1x18x128xf32, #tpu.memory_space<vmem>>, vector<1x16x128xf32>
    %4 = vector.shape_cast %3 : vector<1x16x128xf32> to vector<16x128xf32>
    %c0_4 = arith.constant 0 : index
    %c0_5 = arith.constant 0 : index
    %c0_6 = arith.constant 0 : index
    %5 = vector.load %arg2[%c0_4, %c0_5, %c0_6] : memref<3x128x384xf32, #tpu.memory_space<vmem>>, vector<1x128x384xf32>
    %6 = vector.shape_cast %5 : vector<1x128x384xf32> to vector<128x384xf32>
    %cst = arith.constant dense<0.000000e+00> : vector<16x384xf32>
    %7 = tpu.matmul %4, %6, %cst {dimension_numbers = #tpu.dot_dimension_numbers<[1], [0], [0], [1], [0, 0, 1, 1], [], []>} : vector<16x128xf32>, vector<128x384xf32>, vector<16x384xf32> -> vector<16x384xf32>
    %8 = arith.addf %2, %7 : vector<16x384xf32>
    %c0_7 = arith.constant 0 : index
    %c1 = arith.constant 1 : index
    %c0_8 = arith.constant 0 : index
    %9 = vector.load %arg1[%c0_7, %c1, %c0_8] : memref<1x18x128xf32, #tpu.memory_space<vmem>>, vector<1x16x128xf32>
    %10 = vector.shape_cast %9 : vector<1x16x128xf32> to vector<16x128xf32>
    %c1_9 = arith.constant 1 : index
    %c0_10 = arith.constant 0 : index
    %c0_11 = arith.constant 0 : index
    %11 = vector.load %arg2[%c1_9, %c0_10, %c0_11] : memref<3x128x384xf32, #tpu.memory_space<vmem>>, vector<1x128x384xf32>
    %12 = vector.shape_cast %11 : vector<1x128x384xf32> to vector<128x384xf32>
    %cst_12 = arith.constant dense<0.000000e+00> : vector<16x384xf32>
    %13 = tpu.matmul %10, %12, %cst_12 {dimension_numbers = #tpu.dot_dimension_numbers<[1], [0], [0], [1], [0, 0, 1, 1], [], []>} : vector<16x128xf32>, vector<128x384xf32>, vector<16x384xf32> -> vector<16x384xf32>
    %14 = arith.addf %8, %13 : vector<16x384xf32>
    %c0_13 = arith.constant 0 : index
    %c2 = arith.constant 2 : index
    %c0_14 = arith.constant 0 : index
    %15 = vector.load %arg1[%c0_13, %c2, %c0_14] : memref<1x18x128xf32, #tpu.memory_space<vmem>>, vector<1x16x128xf32>
    %16 = vector.shape_cast %15 : vector<1x16x128xf32> to vector<16x128xf32>
    %c2_15 = arith.constant 2 : index
    %c0_16 = arith.constant 0 : index
    %c0_17 = arith.constant 0 : index
    %17 = vector.load %arg2[%c2_15, %c0_16, %c0_17] : memref<3x128x384xf32, #tpu.memory_space<vmem>>, vector<1x128x384xf32>
    %18 = vector.shape_cast %17 : vector<1x128x384xf32> to vector<128x384xf32>
    %cst_18 = arith.constant dense<0.000000e+00> : vector<16x384xf32>
    %19 = tpu.matmul %16, %18, %cst_18 {dimension_numbers = #tpu.dot_dimension_numbers<[1], [0], [0], [1], [0, 0, 1, 1], [], []>} : vector<16x128xf32>, vector<128x384xf32>, vector<16x384xf32> -> vector<16x384xf32>
    %20 = arith.addf %14, %19 : vector<16x384xf32>
    %c0_19 = arith.constant 0 : index
    %c0_20 = arith.constant 0 : index
    %c0_21 = arith.constant 0 : index
    %21 = vector.load %arg4[%c0_19, %c0_20, %c0_21] : memref<1x16x384xf32, #tpu.memory_space<vmem>>, vector<1x16x384xf32>
    %22 = vector.shape_cast %21 : vector<1x16x384xf32> to vector<16x384xf32>
    %23 = vector.shape_cast %20 : vector<16x384xf32> to vector<1x16x384xf32>
    tpu.vector_store %arg4[%c0_19, %c0_20, %c0_21], %23 {strides = array<i32>} : memref<1x16x384xf32, #tpu.memory_space<vmem>>, vector<1x16x384xf32>,
    return
  }
  func.func @transform_0(%arg0: i32) -> (i32, i32, i32) {
    %c0_i32 = arith.constant 0 : i32
    %c0_i32_0 = arith.constant 0 : i32
    %c0_i32_1 = arith.constant 0 : i32
    return %arg0, %c0_i32, %c0_i32_0 : i32, i32, i32
  }
  func.func @transform_1(%arg0: i32) -> (i32, i32, i32) {
    %c0_i32 = arith.constant 0 : i32
    %c0_i32_0 = arith.constant 0 : i32
    %c0_i32_1 = arith.constant 0 : i32
    %c0_i32_2 = arith.constant 0 : i32
    return %c0_i32, %c0_i32_0, %c0_i32_1 : i32, i32, i32
  }
  func.func @transform_2(%arg0: i32) -> (i32, i32) {
    %c0_i32 = arith.constant 0 : i32
    %c0_i32_0 = arith.constant 0 : i32
    %c0_i32_1 = arith.constant 0 : i32
    return %c0_i32, %c0_i32_0 : i32, i32
  }
  func.func @transform_3(%arg0: i32) -> (i32, i32, i32) {
    %c0_i32 = arith.constant 0 : i32
    %c0_i32_0 = arith.constant 0 : i32
    %c0_i32_1 = arith.constant 0 : i32
    return %arg0, %c0_i32, %c0_i32_0 : i32, i32, i32
  }
}

</mosaic_0001>

<llo_original>
// kernel: tpu_custom_call.1
$region0: #{tpu_custom_call.1}
  #allocation0 [shape = 'u32[]', space=smem, size = 0x4, offset = 0x4, fixed_abs, tag = 'smem constant byte address 0x4 - core index']
  #allocation1 [shape = 'u32[144,128]{1,0:T(1,128)}', space=vmem, size = 0x12000, scoped, tag = 'internal scratch']
  %s0 = inlined_call_operand.vmem [shape: f32[8,18,128], index: 0, kind: input, shape index: {}]
  %s1 = inlined_call_operand.hbm [shape: f32[3,128,384], index: 1, kind: input, shape index: {}]
  %s2 = inlined_call_operand.vmem [shape: f32[1,384], index: 2, kind: input, shape index: {}]
  %s3 = inlined_call_operand.hbm [shape: f32[8,16,384], index: 3, kind: output, shape index: {}]
  %s4 = sld [smem:[#allocation0]]
  $region49: #{tpu_custom_call.1} parent=0
    _
  %s6 = ssub.s32 1, %s4
  %s7 = scalar_select 0, %s6, %s4
  $region1: #{tpu_custom_call.1} parent=0
    #allocation2 [shape = 'u8[589824]{0}', space=vmem, size = 0x90000, scoped, tag = 'input window, operand 1, single buffered']
    #allocation3 [shape = 's32[2]{0}', space=sflag, size = 0x8, scoped, tag = 'scoped memory for tpu_custom_call.1']
    #allocation4 [shape = 's32[2]{0}', space=sflag, size = 0x8, scoped, tag = 'scoped memory for tpu_custom_call.1']
    #allocation5 [shape = 'u8[49152]{0}', space=vmem, size = 0xc000, scoped, tag = 'output window, operand 0']
    %8 = vsyncpa [#allocation3], 0
    %9 = vsyncpa [#allocation4], 0
    %s10 = scalar_lea.sflag [#allocation4], 1
    %11 = vsyncpa %s10, 0
    loop: start=0, step=1, limit=10
    $region2: #{tpu_custom_call.1} parent=1 // loop_pre_header
      _
    $region3: #{tpu_custom_call.1} parent=1 // loop_header
      %s13 = sphi 0, %s17
      %p14 = scmp.ge.s32.totalorder %s13, 10
      %s23 = sphi 0, %s25
      %s26 = sphi 0, %s23
      %s27 = sphi 0, %s26
      %s43 = sphi 0, %s27
      %s47 = sphi 0, %s47
      %s49 = sphi 0, %s47
      %s50 = sphi 0, %s49
      %s64 = sphi 0, %s50
      %s68 = sphi 0, %s68
      %s70 = sphi 0, %s68
      %s71 = sphi 0, %s70
      %s85 = sphi 0, %s71
      %s91 = sphi 0, %s93
      %s94 = sphi 0, %s91
      %s95 = sphi 0, %s94
      %s111 = sphi 0, %s95
    $region4: #{tpu_custom_call.1} parent=1 // loop_header_branch
      %16 = sbr.rel (%p14) target = $region8
    $region5: #{tpu_custom_call.1} parent=1 // loop_body
      %s18 = ssub.s32 %s13, 1
      %s19 = ssub.s32 %s13, 2
      %s20 = sadd.s32 %s13, 1
      %s21 = ssub.s32 %s13, %s20
      %p22 = scmp.eq.s32.totalorder %s21, 0
      %s24 = sadd.s32 %s23, 1
      %s25 = scalar_select %p22, %s23, %s24
      %p28 = pneg %p22
      %p29 = scmp.eq.s32.totalorder %s13, 7
      %p30 = por %p28, %p29
      %p31 = scmp.ne.s32.totalorder %s23, %s26
      %p32 = scmp.eq.s32.totalorder %s13, 0
      %p33 = por %p31, %p32
      %p34 = scmp.ne.s32.totalorder %s23, %s26
      %p35 = scmp.eq.s32.totalorder %s18, 7
      %p36 = por %p34, %p35
      %p37 = scmp.ne.s32.totalorder %s26, %s27
      %p38 = scmp.eq.s32.totalorder %s18, 0
      %p39 = por %p37, %p38
      %p40 = scmp.ne.s32.totalorder %s26, %s27
      %p41 = scmp.eq.s32.totalorder %s19, 7
      %p42 = por %p40, %p41
      %p44 = scmp.ne.s32.totalorder %s27, %s43
      %p45 = scmp.eq.s32.totalorder %s19, 0
      %p46 = por %p44, %p45
      %s48 = sadd.s32 %s47, 1
      %p51 = scmp.eq.s32.totalorder %s13, 7
      %p52 = scmp.ne.s32.totalorder %s47, %s49
      %p53 = scmp.eq.s32.totalorder %s13, 0
      %p54 = por %p52, %p53
      %p55 = scmp.ne.s32.totalorder %s47, %s49
      %p56 = scmp.eq.s32.totalorder %s18, 7
      %p57 = por %p55, %p56
      %p58 = scmp.ne.s32.totalorder %s49, %s50
      %p59 = scmp.eq.s32.totalorder %s18, 0
      %p60 = por %p58, %p59
      %p61 = scmp.ne.s32.totalorder %s49, %s50
      %p62 = scmp.eq.s32.totalorder %s19, 7
      %p63 = por %p61, %p62
      %p65 = scmp.ne.s32.totalorder %s50, %s64
      %p66 = scmp.eq.s32.totalorder %s19, 0
      %p67 = por %p65, %p66
      %s69 = sadd.s32 %s68, 1
      %p72 = scmp.eq.s32.totalorder %s13, 7
      %p73 = scmp.ne.s32.totalorder %s68, %s70
      %p74 = scmp.eq.s32.totalorder %s13, 0
      %p75 = por %p73, %p74
      %p76 = scmp.ne.s32.totalorder %s68, %s70
      %p77 = scmp.eq.s32.totalorder %s18, 7
      %p78 = por %p76, %p77
      %p79 = scmp.ne.s32.totalorder %s70, %s71
      %p80 = scmp.eq.s32.totalorder %s18, 0
      %p81 = por %p79, %p80
      %p82 = scmp.ne.s32.totalorder %s70, %s71
      %p83 = scmp.eq.s32.totalorder %s19, 7
      %p84 = por %p82, %p83
      %p86 = scmp.ne.s32.totalorder %s71, %s85
      %p87 = scmp.eq.s32.totalorder %s19, 0
      %p88 = por %p86, %p87
      %s89 = ssub.s32 %s13, %s20
      %p90 = scmp.eq.s32.totalorder %s89, 0
      %s92 = sadd.s32 %s91, 1
      %s93 = scalar_select %p90, %s91, %s92
      %p96 = pneg %p90
      %p97 = scmp.eq.s32.totalorder %s13, 7
      %p98 = por %p96, %p97
      %p99 = scmp.ne.s32.totalorder %s91, %s94
      %p100 = scmp.eq.s32.totalorder %s13, 0
      %p101 = por %p99, %p100
      %p102 = scmp.ne.s32.totalorder %s91, %s94
      %p103 = scmp.eq.s32.totalorder %s18, 7
      %p104 = por %p102, %p103
      %p105 = scmp.ne.s32.totalorder %s94, %s95
      %p106 = scmp.eq.s32.totalorder %s18, 0
      %p107 = por %p105, %p106
      %p108 = scmp.ne.s32.totalorder %s94, %s95
      %p109 = scmp.eq.s32.totalorder %s19, 7
      %p110 = por %p108, %p109
      %p112 = scmp.ne.s32.totalorder %s95, %s111
      %p113 = scmp.eq.s32.totalorder %s19, 0
      %p114 = por %p112, %p113
      %p115 = scmp.le.s32.totalorder 1, %s13
      %p116 = scmp.lt.s32.totalorder %s13, 9
      %p117 = pnand %p115, %p116
      %p118 = pneg %p117
      // Predicated region
      $region9: #{tpu_custom_call.1} parent=5 // pred_check
        _
      $region10: #{tpu_custom_call.1} parent=5 // pred_check_branch
        %120 = sbr.rel (%p117) target = $region12
      $region11: #{tpu_custom_call.1} parent=5 // pred_region
        %s121 = ssub.s32 %s13, 1
        // Predicated region
        $region13: #{tpu_custom_call.1} parent=11 // pred_check
          %p122 = pneg %p60
        $region14: #{tpu_custom_call.1} parent=11 // pred_check_branch
          %124 = sbr.rel (%p122) target = $region16
        $region15: #{tpu_custom_call.1} parent=11 // pred_region
          %s126 = ssub.s32 18432, 18432
          %127 = vsyncadd [#allocation3], %s126
          %s128 = sshll.u32 [#allocation2], 4
          %s129 = int_to_ptr.vmem [resolvable:$true] %s128
          %134 = dma.hbm_to_vmem [thread:$0]  %s1, 18432, %s129, [#allocation3], 384, 384, 24
        $region16: #{tpu_custom_call.1} parent=11 // pred_fallthru
          _
        // Predicated region
        $region17: #{tpu_custom_call.1} parent=11 // pred_check
          %p135 = pneg %p81
        $region18: #{tpu_custom_call.1} parent=11 // pred_check_branch
          %137 = sbr.rel (%p135) target = $region20
        $region19: #{tpu_custom_call.1} parent=11 // pred_region
          _
        $region20: #{tpu_custom_call.1} parent=11 // pred_fallthru
          _
      $region12: #{tpu_custom_call.1} parent=5 // pred_fallthru
        _
      %p138 = scmp.lt.s32.totalorder %s13, 8
      // Predicated region
      $region21: #{tpu_custom_call.1} parent=5 // pred_check
        %p139 = pneg %p138
      $region22: #{tpu_custom_call.1} parent=5 // pred_check_branch
        %141 = sbr.rel (%p139) target = $region24
      $region23: #{tpu_custom_call.1} parent=5 // pred_region
        // Predicated region
        $region25: #{tpu_custom_call.1} parent=23 // pred_check
          %p142 = pneg %p33
        $region26: #{tpu_custom_call.1} parent=23 // pred_check_branch
          %144 = sbr.rel (%p142) target = $region28
        $region27: #{tpu_custom_call.1} parent=23 // pred_region
          %p145 = scmp.lt.s32.totalorder %s13, 7
          %s146 = scalar_select %p145, %s13, 7
          %s147 = smul.addr %s146, 3
          %s148 = smul.addr %s147, 8
          %s149 = scalar_lea.vmem %s0, %s148
        $region28: #{tpu_custom_call.1} parent=23 // pred_fallthru
          _
      $region24: #{tpu_custom_call.1} parent=5 // pred_fallthru
        _
      %p150 = scmp.le.s32.totalorder 1, %s13
      %p151 = scmp.lt.s32.totalorder %s13, 9
      %p152 = pnand %p150, %p151
      %p153 = pneg %p152
      // Predicated region
      $region29: #{tpu_custom_call.1} parent=5 // pred_check
        _
      $region30: #{tpu_custom_call.1} parent=5 // pred_check_branch
        %155 = sbr.rel (%p152) target = $region32
      $region31: #{tpu_custom_call.1} parent=5 // pred_region
        %s156 = ssub.s32 %s13, 1
        // Predicated region
        $region33: #{tpu_custom_call.1} parent=31 // pred_check
          %p157 = pneg %p60
        $region34: #{tpu_custom_call.1} parent=31 // pred_check_branch
          %159 = sbr.rel (%p157) target = $region36
        $region35: #{tpu_custom_call.1} parent=31 // pred_region
          %160 = dma.done [#allocation3], 18432
        $region36: #{tpu_custom_call.1} parent=31 // pred_fallthru
          _
        %p161 = scmp.lt.s32.totalorder %s18, 7
        %s162 = scalar_select %p161, %s18, 7
        %s163 = smul.addr %s162, 3
        %s164 = smul.addr %s163, 8
        %s165 = scalar_lea.vmem %s0, %s164
        %p166 = pneg %p39
        %p167 = pneg %p36
        %p168 = pneg %p60
        %p169 = pneg %p57
        %p170 = pneg %p81
        %p171 = pneg %p78
        %p172 = pneg %p107
        %p173 = pneg %p104
        %s174 = sand.u32 %s94, 1
        %s175 = scalar_lea.sflag [#allocation4], %s174
        %s176 = sand.u32 %s94, 1
        %s177 = smul.addr %s176, 48
        %s178 = scalar_lea.vmem [#allocation5], %s177
        %p179 = scmp.lt.s32.totalorder %s18, 7
        %s180 = scalar_select %p179, %s18, 7
        %s181 = smul.addr %s180, 3
        %s182 = smul.addr %s181, 8
        %s183 = scalar_lea.vmem %s0, %s182
        %v184 = vld [vmem:[%s2] sm:$0x7]
        %v186 = vlaneseq
        %v187 = vshrl.u32 %v186, 7
        %v188 = vsub.s32 0, %v187
        %v189 = vrot.slane %v184, %v188
        %v190 = vlaneseq
        %v191 = vshrl.u32 %v190, 7
        %v192 = vsub.s32 1, %v191
        %v193 = vrot.slane %v184, %v192
        %v194 = vlaneseq
        %v195 = vshrl.u32 %v194, 7
        %v196 = vsub.s32 2, %v195
        %v197 = vrot.slane %v184, %v196
        %v201 = vld [vmem:[%s183] sm:$0xff]
        %v202 = vld [vmem:[%s183 + $0x8] sm:$0xff]
        %v203 = vld [vmem:[#allocation2] sm:$0xff]
        %v204 = vld [vmem:[#allocation2 + $0x8] sm:$0xff]
        %v205 = vld [vmem:[#allocation2 + $0x10] sm:$0xff]
        %v206 = vld [vmem:[#allocation2 + $0x18] sm:$0xff]
        %v207 = vld [vmem:[#allocation2 + $0x20] sm:$0xff]
        %v208 = vld [vmem:[#allocation2 + $0x28] sm:$0xff]
        %v209 = vld [vmem:[#allocation2 + $0x30] sm:$0xff]
        %v210 = vld [vmem:[#allocation2 + $0x38] sm:$0xff]
        %v211 = vld [vmem:[#allocation2 + $0x40] sm:$0xff]
        %v212 = vld [vmem:[#allocation2 + $0x48] sm:$0xff]
        %v213 = vld [vmem:[#allocation2 + $0x50] sm:$0xff]
        %v214 = vld [vmem:[#allocation2 + $0x58] sm:$0xff]
        %v215 = vld [vmem:[#allocation2 + $0x60] sm:$0xff]
        %v216 = vld [vmem:[#allocation2 + $0x68] sm:$0xff]
        %v217 = vld [vmem:[#allocation2 + $0x70] sm:$0xff]
        %v218 = vld [vmem:[#allocation2 + $0x78] sm:$0xff]
        %v219 = vld [vmem:[#allocation2 + $0x80] sm:$0xff]
        %v220 = vld [vmem:[#allocation2 + $0x88] sm:$0xff]
        %v221 = vld [vmem:[#allocation2 + $0x90] sm:$0xff]
        %v222 = vld [vmem:[#allocation2 + $0x98] sm:$0xff]
        %v223 = vld [vmem:[#allocation2 + $0xa0] sm:$0xff]
        %v224 = vld [vmem:[#allocation2 + $0xa8] sm:$0xff]
        %v225 = vld [vmem:[#allocation2 + $0xb0] sm:$0xff]
        %v226 = vld [vmem:[#allocation2 + $0xb8] sm:$0xff]
        %v227 = vld [vmem:[#allocation2 + $0xc0] sm:$0xff]
        %v228 = vld [vmem:[#allocation2 + $0xc8] sm:$0xff]
        %v229 = vld [vmem:[#allocation2 + $0xd0] sm:$0xff]
        %v230 = vld [vmem:[#allocation2 + $0xd8] sm:$0xff]
        %v231 = vld [vmem:[#allocation2 + $0xe0] sm:$0xff]
        %v232 = vld [vmem:[#allocation2 + $0xe8] sm:$0xff]
        %v233 = vld [vmem:[#allocation2 + $0xf0] sm:$0xff]
        %v234 = vld [vmem:[#allocation2 + $0xf8] sm:$0xff]
        %v235 = vld [vmem:[#allocation2 + $0x100] sm:$0xff]
        %v236 = vld [vmem:[#allocation2 + $0x108] sm:$0xff]
        %v237 = vld [vmem:[#allocation2 + $0x110] sm:$0xff]
        %v238 = vld [vmem:[#allocation2 + $0x118] sm:$0xff]
        %v239 = vld [vmem:[#allocation2 + $0x120] sm:$0xff]
        %v240 = vld [vmem:[#allocation2 + $0x128] sm:$0xff]
        %v241 = vld [vmem:[#allocation2 + $0x130] sm:$0xff]
        %v242 = vld [vmem:[#allocation2 + $0x138] sm:$0xff]
        %v243 = vld [vmem:[#allocation2 + $0x140] sm:$0xff]
        %v244 = vld [vmem:[#allocation2 + $0x148] sm:$0xff]
        %v245 = vld [vmem:[#allocation2 + $0x150] sm:$0xff]
        %v246 = vld [vmem:[#allocation2 + $0x158] sm:$0xff]
        %v247 = vld [vmem:[#allocation2 + $0x160] sm:$0xff]
        %v248 = vld [vmem:[#allocation2 + $0x168] sm:$0xff]
        %v249 = vld [vmem:[#allocation2 + $0x170] sm:$0xff]
        %v250 = vld [vmem:[#allocation2 + $0x178] sm:$0xff]
        %251 = vmatprep.subr.mxu0 %v204
        %252 = vmatpush1.msra.mxu0 %v203
        %253 = vmatprep.subr.mxu0 %v207
        %254 = vmatpush1.msra.mxu0 %v206
        %255 = vmatprep.subr.mxu0 %v210
        %256 = vmatpush1.msra.mxu0 %v209
        %257 = vmatprep.subr.mxu0 %v213
        %258 = vmatpush1.msra.mxu0 %v212
        %259 = vmatprep.subr.mxu0 %v216
        %260 = vmatpush1.msra.mxu0 %v215
        %261 = vmatprep.subr.mxu0 %v219
        %262 = vmatpush1.msra.mxu0 %v218
        %263 = vmatprep.subr.mxu0 %v222
        %264 = vmatpush1.msra.mxu0 %v221
        %265 = vmatprep.subr.mxu0 %v225
        %266 = vmatpush1.msra.mxu0 %v224
        %267 = vmatprep.subr.mxu0 %v228
        %268 = vmatpush1.msra.mxu0 %v227
        %269 = vmatprep.subr.mxu0 %v231
        %270 = vmatpush1.msra.mxu0 %v230
        %271 = vmatprep.subr.mxu0 %v234
        %272 = vmatpush1.msra.mxu0 %v233
        %273 = vmatprep.subr.mxu0 %v237
        %274 = vmatpush1.msra.mxu0 %v236
        %275 = vmatprep.subr.mxu0 %v240
        %276 = vmatpush1.msra.mxu0 %v239
        %277 = vmatprep.subr.mxu0 %v243
        %278 = vmatpush1.msra.mxu0 %v242
        %279 = vmatprep.subr.mxu0 %v246
        %280 = vmatpush1.msra.mxu0 %v245
        %281 = vmatprep.subr.mxu0 %v249
        %282 = vmatpush1.msra.mxu0 %v248
        %283 = vmatprep.subr.mxu0 0.0
        %284 = vmatpush1.msra.mxu0 0.0
        %285 = vmatprep.subr.mxu0 0.0
        %286 = vmatpush1.msra.mxu0 0.0
        %287 = vmatprep.subr.mxu0 0.0
        %288 = vmatpush1.msra.mxu0 0.0
        %289 = vmatprep.subr.mxu0 0.0
        %290 = vmatpush1.msra.mxu0 0.0
        %291 = vmatprep.subr.mxu0 0.0
        %292 = vmatpush1.msra.mxu0 0.0
        %293 = vmatprep.subr.mxu0 0.0
        %294 = vmatpush1.msra.mxu0 0.0
        %295 = vmatprep.subr.mxu0 0.0
        %296 = vmatpush1.msra.mxu0 0.0
        %297 = vmatprep.subr.mxu0 0.0
        %298 = vmatpush1.msra.mxu0 0.0
        %299 = vmatprep.subr.mxu0 0.0
        %300 = vmatpush1.msra.mxu0 0.0
        %301 = vmatprep.subr.mxu0 0.0
        %302 = vmatpush1.msra.mxu0 0.0
        %303 = vmatprep.subr.mxu0 0.0
        %304 = vmatpush1.msra.mxu0 0.0
        %305 = vmatprep.subr.mxu0 0.0
        %306 = vmatpush1.msra.mxu0 0.0
        %307 = vmatprep.subr.mxu0 0.0
        %308 = vmatpush1.msra.mxu0 0.0
        %309 = vmatprep.subr.mxu0 0.0
        %310 = vmatpush1.msra.mxu0 0.0
        %311 = vmatprep.subr.mxu0 0.0
        %312 = vmatpush1.msra.mxu0 0.0
        %313 = vmatprep.subr.mxu0 0.0
        %314 = vmatpush1.msra.mxu0 0.0
        %315 = vmatprep.mubr.f32.mxu0 0.0
        %316 = vmatmul.mubr.f32.gmra.mrb[0].mxu0 %v201
        %v317 = vpop.f32.mrb[0].mxu0
        %v318 = vadd.f32 0.0, %v317
        %v319 = vpop.f32.mrb[0].mxu0
        %v320 = vadd.f32 0.0, %v319
        %321 = vmatprep.mubr.f32.mxu0 0.0
        %322 = vmatmul.mubr.f32.gmra.mrb[0].mxu0 %v202
        %v323 = vpop.f32.mrb[0].mxu0
        %v324 = vadd.f32 0.0, %v323
        %v325 = vpop.f32.mrb[0].mxu0
        %v326 = vadd.f32 0.0, %v325
        %327 = vdwg.mxu0
        %328 = vmatprep.subr.mxu0 0.0
        %329 = vmatpush1.msra.mxu0 %v205
        %330 = vmatprep.subr.mxu0 0.0
        %331 = vmatpush1.msra.mxu0 %v208
        %332 = vmatprep.subr.mxu0 0.0
        %333 = vmatpush1.msra.mxu0 %v211
        %334 = vmatprep.subr.mxu0 0.0
        %335 = vmatpush1.msra.mxu0 %v214
        %336 = vmatprep.subr.mxu0 0.0
        %337 = vmatpush1.msra.mxu0 %v217
        %338 = vmatprep.subr.mxu0 0.0
        %339 = vmatpush1.msra.mxu0 %v220
        %340 = vmatprep.subr.mxu0 0.0
        %341 = vmatpush1.msra.mxu0 %v223
        %342 = vmatprep.subr.mxu0 0.0
        %343 = vmatpush1.msra.mxu0 %v226
        %344 = vmatprep.subr.mxu0 0.0
        %345 = vmatpush1.msra.mxu0 %v229
        %346 = vmatprep.subr.mxu0 0.0
        %347 = vmatpush1.msra.mxu0 %v232
        %348 = vmatprep.subr.mxu0 0.0
        %349 = vmatpush1.msra.mxu0 %v235
        %350 = vmatprep.subr.mxu0 0.0
        %351 = vmatpush1.msra.mxu0 %v238
        %352 = vmatprep.subr.mxu0 0.0
        %353 = vmatpush1.msra.mxu0 %v241
        %354 = vmatprep.subr.mxu0 0.0
        %355 = vmatpush1.msra.mxu0 %v244
        %356 = vmatprep.subr.mxu0 0.0
        %357 = vmatpush1.msra.mxu0 %v247
        %358 = vmatprep.subr.mxu0 0.0
        %359 = vmatpush1.msra.mxu0 %v250
        %360 = vmatprep.subr.mxu0 0.0
        %361 = vmatpush1.msra.mxu0 0.0
        %362 = vmatprep.subr.mxu0 0.0
        %363 = vmatpush1.msra.mxu0 0.0
        %364 = vmatprep.subr.mxu0 0.0
        %365 = vmatpush1.msra.mxu0 0.0
        %366 = vmatprep.subr.mxu0 0.0
        %367 = vmatpush1.msra.mxu0 0.0
        %368 = vmatprep.subr.mxu0 0.0
        %369 = vmatpush1.msra.mxu0 0.0
        %370 = vmatprep.subr.mxu0 0.0
        %371 = vmatpush1.msra.mxu0 0.0
        %372 = vmatprep.subr.mxu0 0.0
        %373 = vmatpush1.msra.mxu0 0.0
        %374 = vmatprep.subr.mxu0 0.0
        %375 = vmatpush1.msra.mxu0 0.0
        %376 = vmatprep.subr.mxu0 0.0
        %377 = vmatpush1.msra.mxu0 0.0
        %378 = vmatprep.subr.mxu0 0.0
        %379 = vmatpush1.msra.mxu0 0.0
        %380 = vmatprep.subr.mxu0 0.0
        %381 = vmatpush1.msra.mxu0 0.0
        %382 = vmatprep.subr.mxu0 0.0
        %383 = vmatpush1.msra.mxu0 0.0
        %384 = vmatprep.subr.mxu0 0.0
        %385 = vmatpush1.msra.mxu0 0.0
        %386 = vmatprep.subr.mxu0 0.0
        %387 = vmatpush1.msra.mxu0 0.0
        %388 = vmatprep.subr.mxu0 0.0
        %389 = vmatpush1.msra.mxu0 0.0
        %390 = vmatprep.subr.mxu0 0.0
        %391 = vmatpush1.msra.mxu0 0.0
        %392 = vmatprep.mubr.f32.mxu0 0.0
        %393 = vmatmul.mubr.f32.gmra.mrb[0].mxu0 %v201
        %v394 = vpop.f32.mrb[0].mxu0
        %v395 = vadd.f32 0.0, %v394
        %v396 = vpop.f32.mrb[0].mxu0
        %397 = vmatprep.mubr.f32.mxu0 0.0
        %398 = vmatmul.mubr.f32.gmra.mrb[0].mxu0 %v202
        %v399 = vpop.f32.mrb[0].mxu0
        %v400 = vadd.f32 0.0, %v399
        %v401 = vpop.f32.mrb[0].mxu0
        %402 = vdwg.mxu0
        %v403 = vadd.f32 %v189, %v318
        %v404 = vadd.f32 %v193, %v320
        %v405 = vadd.f32 %v197, %v395
        %v406 = vadd.f32 %v189, %v324
        %v407 = vadd.f32 %v193, %v326
        %v408 = vadd.f32 %v197, %v400
        %v409 = vld [vmem:[%s183 + $0x1] sm:$0xff]
        %v410 = vld [vmem:[%s183 + $0x9] sm:$0xff]
        %s411 = scalar_lea.vmem [#allocation2], 384
        %v412 = vld [vmem:[%s411] sm:$0xff]
        %v413 = vld [vmem:[%s411 + $0x8] sm:$0xff]
        %v414 = vld [vmem:[%s411 + $0x10] sm:$0xff]
        %v415 = vld [vmem:[%s411 + $0x18] sm:$0xff]
        %v416 = vld [vmem:[%s411 + $0x20] sm:$0xff]
        %v417 = vld [vmem:[%s411 + $0x28] sm:$0xff]
        %v418 = vld [vmem:[%s411 + $0x30] sm:$0xff]
        %v419 = vld [vmem:[%s411 + $0x38] sm:$0xff]
        %v420 = vld [vmem:[%s411 + $0x40] sm:$0xff]
        %v421 = vld [vmem:[%s411 + $0x48] sm:$0xff]
        %v422 = vld [vmem:[%s411 + $0x50] sm:$0xff]
        %v423 = vld [vmem:[%s411 + $0x58] sm:$0xff]
        %v424 = vld [vmem:[%s411 + $0x60] sm:$0xff]
        %v425 = vld [vmem:[%s411 + $0x68] sm:$0xff]
        %v426 = vld [vmem:[%s411 + $0x70] sm:$0xff]
        %v427 = vld [vmem:[%s411 + $0x78] sm:$0xff]
        %v428 = vld [vmem:[%s411 + $0x80] sm:$0xff]
        %v429 = vld [vmem:[%s411 + $0x88] sm:$0xff]
        %v430 = vld [vmem:[%s411 + $0x90] sm:$0xff]
        %v431 = vld [vmem:[%s411 + $0x98] sm:$0xff]
        %v432 = vld [vmem:[%s411 + $0xa0] sm:$0xff]
        %v433 = vld [vmem:[%s411 + $0xa8] sm:$0xff]
        %v434 = vld [vmem:[%s411 + $0xb0] sm:$0xff]
        %v435 = vld [vmem:[%s411 + $0xb8] sm:$0xff]
        %v436 = vld [vmem:[%s411 + $0xc0] sm:$0xff]
        %v437 = vld [vmem:[%s411 + $0xc8] sm:$0xff]
        %v438 = vld [vmem:[%s411 + $0xd0] sm:$0xff]
        %v439 = vld [vmem:[%s411 + $0xd8] sm:$0xff]
        %v440 = vld [vmem:[%s411 + $0xe0] sm:$0xff]
        %v441 = vld [vmem:[%s411 + $0xe8] sm:$0xff]
        %v442 = vld [vmem:[%s411 + $0xf0] sm:$0xff]
        %v443 = vld [vmem:[%s411 + $0xf8] sm:$0xff]
        %v444 = vld [vmem:[%s411 + $0x100] sm:$0xff]
        %v445 = vld [vmem:[%s411 + $0x108] sm:$0xff]
        %v446 = vld [vmem:[%s411 + $0x110] sm:$0xff]
        %v447 = vld [vmem:[%s411 + $0x118] sm:$0xff]
        %v448 = vld [vmem:[%s411 + $0x120] sm:$0xff]
        %v449 = vld [vmem:[%s411 + $0x128] sm:$0xff]
        %v450 = vld [vmem:[%s411 + $0x130] sm:$0xff]
        %v451 = vld [vmem:[%s411 + $0x138] sm:$0xff]
        %v452 = vld [vmem:[%s411 + $0x140] sm:$0xff]
        %v453 = vld [vmem:[%s411 + $0x148] sm:$0xff]
        %v454 = vld [vmem:[%s411 + $0x150] sm:$0xff]
        %v455 = vld [vmem:[%s411 + $0x158] sm:$0xff]
        %v456 = vld [vmem:[%s411 + $0x160] sm:$0xff]
        %v457 = vld [vmem:[%s411 + $0x168] sm:$0xff]
        %v458 = vld [vmem:[%s411 + $0x170] sm:$0xff]
        %v459 = vld [vmem:[%s411 + $0x178] sm:$0xff]
        %460 = vmatprep.subr.mxu0 %v413
        %461 = vmatpush1.msra.mxu0 %v412
        %462 = vmatprep.subr.mxu0 %v416
        %463 = vmatpush1.msra.mxu0 %v415
        %464 = vmatprep.subr.mxu0 %v419
        %465 = vmatpush1.msra.mxu0 %v418
        %466 = vmatprep.subr.mxu0 %v422
        %467 = vmatpush1.msra.mxu0 %v421
        %468 = vmatprep.subr.mxu0 %v425
        %469 = vmatpush1.msra.mxu0 %v424
        %470 = vmatprep.subr.mxu0 %v428
        %471 = vmatpush1.msra.mxu0 %v427
        %472 = vmatprep.subr.mxu0 %v431
        %473 = vmatpush1.msra.mxu0 %v430
        %474 = vmatprep.subr.mxu0 %v434
        %475 = vmatpush1.msra.mxu0 %v433
        %476 = vmatprep.subr.mxu0 %v437
        %477 = vmatpush1.msra.mxu0 %v436
        %478 = vmatprep.subr.mxu0 %v440
        %479 = vmatpush1.msra.mxu0 %v439
        %480 = vmatprep.subr.mxu0 %v443
        %481 = vmatpush1.msra.mxu0 %v442
        %482 = vmatprep.subr.mxu0 %v446
        %483 = vmatpush1.msra.mxu0 %v445
        %484 = vmatprep.subr.mxu0 %v449
        %485 = vmatpush1.msra.mxu0 %v448
        %486 = vmatprep.subr.mxu0 %v452
        %487 = vmatpush1.msra.mxu0 %v451
        %488 = vmatprep.subr.mxu0 %v455
        %489 = vmatpush1.msra.mxu0 %v454
        %490 = vmatprep.subr.mxu0 %v458
        %491 = vmatpush1.msra.mxu0 %v457
        %492 = vmatprep.subr.mxu0 0.0
        %493 = vmatpush1.msra.mxu0 0.0
        %494 = vmatprep.subr.mxu0 0.0
        %495 = vmatpush1.msra.mxu0 0.0
        %496 = vmatprep.subr.mxu0 0.0
        %497 = vmatpush1.msra.mxu0 0.0
        %498 = vmatprep.subr.mxu0 0.0
        %499 = vmatpush1.msra.mxu0 0.0
        %500 = vmatprep.subr.mxu0 0.0
        %501 = vmatpush1.msra.mxu0 0.0
        %502 = vmatprep.subr.mxu0 0.0
        %503 = vmatpush1.msra.mxu0 0.0
        %504 = vmatprep.subr.mxu0 0.0
        %505 = vmatpush1.msra.mxu0 0.0
        %506 = vmatprep.subr.mxu0 0.0
        %507 = vmatpush1.msra.mxu0 0.0
        %508 = vmatprep.subr.mxu0 0.0
        %509 = vmatpush1.msra.mxu0 0.0
        %510 = vmatprep.subr.mxu0 0.0
        %511 = vmatpush1.msra.mxu0 0.0
        %512 = vmatprep.subr.mxu0 0.0
        %513 = vmatpush1.msra.mxu0 0.0
        %514 = vmatprep.subr.mxu0 0.0
        %515 = vmatpush1.msra.mxu0 0.0
        %516 = vmatprep.subr.mxu0 0.0
        %517 = vmatpush1.msra.mxu0 0.0
        %518 = vmatprep.subr.mxu0 0.0
        %519 = vmatpush1.msra.mxu0 0.0
        %520 = vmatprep.subr.mxu0 0.0
        %521 = vmatpush1.msra.mxu0 0.0
        %522 = vmatprep.subr.mxu0 0.0
        %523 = vmatpush1.msra.mxu0 0.0
        %524 = vmatprep.mubr.f32.mxu0 0.0
        %525 = vmatmul.mubr.f32.gmra.mrb[0].mxu0 %v409
        %v526 = vpop.f32.mrb[0].mxu0
        %v527 = vadd.f32 0.0, %v526
        %v528 = vpop.f32.mrb[0].mxu0
        %v529 = vadd.f32 0.0, %v528
        %530 = vmatprep.mubr.f32.mxu0 0.0
        %531 = vmatmul.mubr.f32.gmra.mrb[0].mxu0 %v410
        %v532 = vpop.f32.mrb[0].mxu0
        %v533 = vadd.f32 0.0, %v532
        %v534 = vpop.f32.mrb[0].mxu0
        %v535 = vadd.f32 0.0, %v534
        %536 = vdwg.mxu0
        %537 = vmatprep.subr.mxu0 0.0
        %538 = vmatpush1.msra.mxu0 %v414
        %539 = vmatprep.subr.mxu0 0.0
        %540 = vmatpush1.msra.mxu0 %v417
        %541 = vmatprep.subr.mxu0 0.0
        %542 = vmatpush1.msra.mxu0 %v420
        %543 = vmatprep.subr.mxu0 0.0
        %544 = vmatpush1.msra.mxu0 %v423
        %545 = vmatprep.subr.mxu0 0.0
        %546 = vmatpush1.msra.mxu0 %v426
        %547 = vmatprep.subr.mxu0 0.0
        %548 = vmatpush1.msra.mxu0 %v429
        %549 = vmatprep.subr.mxu0 0.0
        %550 = vmatpush1.msra.mxu0 %v432
        %551 = vmatprep.subr.mxu0 0.0
        %552 = vmatpush1.msra.mxu0 %v435
        %553 = vmatprep.subr.mxu0 0.0
        %554 = vmatpush1.msra.mxu0 %v438
        %555 = vmatprep.subr.mxu0 0.0
        %556 = vmatpush1.msra.mxu0 %v441
        %557 = vmatprep.subr.mxu0 0.0
        %558 = vmatpush1.msra.mxu0 %v444
        %559 = vmatprep.subr.mxu0 0.0
        %560 = vmatpush1.msra.mxu0 %v447
        %561 = vmatprep.subr.mxu0 0.0
        %562 = vmatpush1.msra.mxu0 %v450
        %563 = vmatprep.subr.mxu0 0.0
        %564 = vmatpush1.msra.mxu0 %v453
        %565 = vmatprep.subr.mxu0 0.0
        %566 = vmatpush1.msra.mxu0 %v456
        %567 = vmatprep.subr.mxu0 0.0
        %568 = vmatpush1.msra.mxu0 %v459
        %569 = vmatprep.subr.mxu0 0.0
        %570 = vmatpush1.msra.mxu0 0.0
        %571 = vmatprep.subr.mxu0 0.0
        %572 = vmatpush1.msra.mxu0 0.0
        %573 = vmatprep.subr.mxu0 0.0
        %574 = vmatpush1.msra.mxu0 0.0
        %575 = vmatprep.subr.mxu0 0.0
        %576 = vmatpush1.msra.mxu0 0.0
        %577 = vmatprep.subr.mxu0 0.0
        %578 = vmatpush1.msra.mxu0 0.0
        %579 = vmatprep.subr.mxu0 0.0
        %580 = vmatpush1.msra.mxu0 0.0
        %581 = vmatprep.subr.mxu0 0.0
        %582 = vmatpush1.msra.mxu0 0.0
        %583 = vmatprep.subr.mxu0 0.0
        %584 = vmatpush1.msra.mxu0 0.0
        %585 = vmatprep.subr.mxu0 0.0
        %586 = vmatpush1.msra.mxu0 0.0
        %587 = vmatprep.subr.mxu0 0.0
        %588 = vmatpush1.msra.mxu0 0.0
        %589 = vmatprep.subr.mxu0 0.0
        %590 = vmatpush1.msra.mxu0 0.0
        %591 = vmatprep.subr.mxu0 0.0
        %592 = vmatpush1.msra.mxu0 0.0
        %593 = vmatprep.subr.mxu0 0.0
        %594 = vmatpush1.msra.mxu0 0.0
        %595 = vmatprep.subr.mxu0 0.0
        %596 = vmatpush1.msra.mxu0 0.0
        %597 = vmatprep.subr.mxu0 0.0
        %598 = vmatpush1.msra.mxu0 0.0
        %599 = vmatprep.subr.mxu0 0.0
        %600 = vmatpush1.msra.mxu0 0.0
        %601 = vmatprep.mubr.f32.mxu0 0.0
        %602 = vmatmul.mubr.f32.gmra.mrb[0].mxu0 %v409
        %v603 = vpop.f32.mrb[0].mxu0
        %v604 = vadd.f32 0.0, %v603
        %v605 = vpop.f32.mrb[0].mxu0
        %606 = vmatprep.mubr.f32.mxu0 0.0
        %607 = vmatmul.mubr.f32.gmra.mrb[0].mxu0 %v410
        %v608 = vpop.f32.mrb[0].mxu0
        %v609 = vadd.f32 0.0, %v608
        %v610 = vpop.f32.mrb[0].mxu0
        %611 = vdwg.mxu0
        %v612 = vadd.f32 %v403, %v527
        %v613 = vadd.f32 %v404, %v529
        %v614 = vadd.f32 %v405, %v604
        %v615 = vadd.f32 %v406, %v533
        %v616 = vadd.f32 %v407, %v535
        %v617 = vadd.f32 %v408, %v609
        %v618 = vld [vmem:[%s183 + $0x2] sm:$0xff]
        %v619 = vld [vmem:[%s183 + $0xa] sm:$0xff]
        %s620 = scalar_lea.vmem [#allocation2], 768
        %v621 = vld [vmem:[%s620] sm:$0xff]
        %v622 = vld [vmem:[%s620 + $0x8] sm:$0xff]
        %v623 = vld [vmem:[%s620 + $0x10] sm:$0xff]
        %v624 = vld [vmem:[%s620 + $0x18] sm:$0xff]
        %v625 = vld [vmem:[%s620 + $0x20] sm:$0xff]
        %v626 = vld [vmem:[%s620 + $0x28] sm:$0xff]
        %v627 = vld [vmem:[%s620 + $0x30] sm:$0xff]
        %v628 = vld [vmem:[%s620 + $0x38] sm:$0xff]
        %v629 = vld [vmem:[%s620 + $0x40] sm:$0xff]
        %v630 = vld [vmem:[%s620 + $0x48] sm:$0xff]
        %v631 = vld [vmem:[%s620 + $0x50] sm:$0xff]
        %v632 = vld [vmem:[%s620 + $0x58] sm:$0xff]
        %v633 = vld [vmem:[%s620 + $0x60] sm:$0xff]
        %v634 = vld [vmem:[%s620 + $0x68] sm:$0xff]
        %v635 = vld [vmem:[%s620 + $0x70] sm:$0xff]
        %v636 = vld [vmem:[%s620 + $0x78] sm:$0xff]
        %v637 = vld [vmem:[%s620 + $0x80] sm:$0xff]
        %v638 = vld [vmem:[%s620 + $0x88] sm:$0xff]
        %v639 = vld [vmem:[%s620 + $0x90] sm:$0xff]
        %v640 = vld [vmem:[%s620 + $0x98] sm:$0xff]
        %v641 = vld [vmem:[%s620 + $0xa0] sm:$0xff]
        %v642 = vld [vmem:[%s620 + $0xa8] sm:$0xff]
        %v643 = vld [vmem:[%s620 + $0xb0] sm:$0xff]
        %v644 = vld [vmem:[%s620 + $0xb8] sm:$0xff]
        %v645 = vld [vmem:[%s620 + $0xc0] sm:$0xff]
        %v646 = vld [vmem:[%s620 + $0xc8] sm:$0xff]
        %v647 = vld [vmem:[%s620 + $0xd0] sm:$0xff]
        %v648 = vld [vmem:[%s620 + $0xd8] sm:$0xff]
        %v649 = vld [vmem:[%s620 + $0xe0] sm:$0xff]
        %v650 = vld [vmem:[%s620 + $0xe8] sm:$0xff]
        %v651 = vld [vmem:[%s620 + $0xf0] sm:$0xff]
        %v652 = vld [vmem:[%s620 + $0xf8] sm:$0xff]
        %v653 = vld [vmem:[%s620 + $0x100] sm:$0xff]
        %v654 = vld [vmem:[%s620 + $0x108] sm:$0xff]
        %v655 = vld [vmem:[%s620 + $0x110] sm:$0xff]
        %v656 = vld [vmem:[%s620 + $0x118] sm:$0xff]
        %v657 = vld [vmem:[%s620 + $0x120] sm:$0xff]
        %v658 = vld [vmem:[%s620 + $0x128] sm:$0xff]
        %v659 = vld [vmem:[%s620 + $0x130] sm:$0xff]
        %v660 = vld [vmem:[%s620 + $0x138] sm:$0xff]
        %v661 = vld [vmem:[%s620 + $0x140] sm:$0xff]
        %v662 = vld [vmem:[%s620 + $0x148] sm:$0xff]
        %v663 = vld [vmem:[%s620 + $0x150] sm:$0xff]
        %v664 = vld [vmem:[%s620 + $0x158] sm:$0xff]
        %v665 = vld [vmem:[%s620 + $0x160] sm:$0xff]
        %v666 = vld [vmem:[%s620 + $0x168] sm:$0xff]
        %v667 = vld [vmem:[%s620 + $0x170] sm:$0xff]
        %v668 = vld [vmem:[%s620 + $0x178] sm:$0xff]
        %669 = vmatprep.subr.mxu0 %v622
        %670 = vmatpush1.msra.mxu0 %v621
        %671 = vmatprep.subr.mxu0 %v625
        %672 = vmatpush1.msra.mxu0 %v624
        %673 = vmatprep.subr.mxu0 %v628
        %674 = vmatpush1.msra.mxu0 %v627
        %675 = vmatprep.subr.mxu0 %v631
        %676 = vmatpush1.msra.mxu0 %v630
        %677 = vmatprep.subr.mxu0 %v634
        %678 = vmatpush1.msra.mxu0 %v633
        %679 = vmatprep.subr.mxu0 %v637
        %680 = vmatpush1.msra.mxu0 %v636
        %681 = vmatprep.subr.mxu0 %v640
        %682 = vmatpush1.msra.mxu0 %v639
        %683 = vmatprep.subr.mxu0 %v643
        %684 = vmatpush1.msra.mxu0 %v642
        %685 = vmatprep.subr.mxu0 %v646
        %686 = vmatpush1.msra.mxu0 %v645
        %687 = vmatprep.subr.mxu0 %v649
        %688 = vmatpush1.msra.mxu0 %v648
        %689 = vmatprep.subr.mxu0 %v652
        %690 = vmatpush1.msra.mxu0 %v651
        %691 = vmatprep.subr.mxu0 %v655
        %692 = vmatpush1.msra.mxu0 %v654
        %693 = vmatprep.subr.mxu0 %v658
        %694 = vmatpush1.msra.mxu0 %v657
        %695 = vmatprep.subr.mxu0 %v661
        %696 = vmatpush1.msra.mxu0 %v660
        %697 = vmatprep.subr.mxu0 %v664
        %698 = vmatpush1.msra.mxu0 %v663
        %699 = vmatprep.subr.mxu0 %v667
        %700 = vmatpush1.msra.mxu0 %v666
        %701 = vmatprep.subr.mxu0 0.0
        %702 = vmatpush1.msra.mxu0 0.0
        %703 = vmatprep.subr.mxu0 0.0
        %704 = vmatpush1.msra.mxu0 0.0
        %705 = vmatprep.subr.mxu0 0.0
        %706 = vmatpush1.msra.mxu0 0.0
        %707 = vmatprep.subr.mxu0 0.0
        %708 = vmatpush1.msra.mxu0 0.0
        %709 = vmatprep.subr.mxu0 0.0
        %710 = vmatpush1.msra.mxu0 0.0
        %711 = vmatprep.subr.mxu0 0.0
        %712 = vmatpush1.msra.mxu0 0.0
        %713 = vmatprep.subr.mxu0 0.0
        %714 = vmatpush1.msra.mxu0 0.0
        %715 = vmatprep.subr.mxu0 0.0
        %716 = vmatpush1.msra.mxu0 0.0
        %717 = vmatprep.subr.mxu0 0.0
        %718 = vmatpush1.msra.mxu0 0.0
        %719 = vmatprep.subr.mxu0 0.0
        %720 = vmatpush1.msra.mxu0 0.0
        %721 = vmatprep.subr.mxu0 0.0
        %722 = vmatpush1.msra.mxu0 0.0
        %723 = vmatprep.subr.mxu0 0.0
        %724 = vmatpush1.msra.mxu0 0.0
        %725 = vmatprep.subr.mxu0 0.0
        %726 = vmatpush1.msra.mxu0 0.0
        %727 = vmatprep.subr.mxu0 0.0
        %728 = vmatpush1.msra.mxu0 0.0
        %729 = vmatprep.subr.mxu0 0.0
        %730 = vmatpush1.msra.mxu0 0.0
        %731 = vmatprep.subr.mxu0 0.0
        %732 = vmatpush1.msra.mxu0 0.0
        %733 = vmatprep.mubr.f32.mxu0 0.0
        %734 = vmatmul.mubr.f32.gmra.mrb[0].mxu0 %v618
        %v735 = vpop.f32.mrb[0].mxu0
        %v736 = vadd.f32 0.0, %v735
        %v737 = vpop.f32.mrb[0].mxu0
        %v738 = vadd.f32 0.0, %v737
        %739 = vmatprep.mubr.f32.mxu0 0.0
        %740 = vmatmul.mubr.f32.gmra.mrb[0].mxu0 %v619
        %v741 = vpop.f32.mrb[0].mxu0
        %v742 = vadd.f32 0.0, %v741
        %v743 = vpop.f32.mrb[0].mxu0
        %v744 = vadd.f32 0.0, %v743
        %745 = vdwg.mxu0
        %746 = vmatprep.subr.mxu0 0.0
        %747 = vmatpush1.msra.mxu0 %v623
        %748 = vmatprep.subr.mxu0 0.0
        %749 = vmatpush1.msra.mxu0 %v626
        %750 = vmatprep.subr.mxu0 0.0
        %751 = vmatpush1.msra.mxu0 %v629
        %752 = vmatprep.subr.mxu0 0.0
        %753 = vmatpush1.msra.mxu0 %v632
        %754 = vmatprep.subr.mxu0 0.0
        %755 = vmatpush1.msra.mxu0 %v635
        %756 = vmatprep.subr.mxu0 0.0
        %757 = vmatpush1.msra.mxu0 %v638
        %758 = vmatprep.subr.mxu0 0.0
        %759 = vmatpush1.msra.mxu0 %v641
        %760 = vmatprep.subr.mxu0 0.0
        %761 = vmatpush1.msra.mxu0 %v644
        %762 = vmatprep.subr.mxu0 0.0
        %763 = vmatpush1.msra.mxu0 %v647
        %764 = vmatprep.subr.mxu0 0.0
        %765 = vmatpush1.msra.mxu0 %v650
        %766 = vmatprep.subr.mxu0 0.0
        %767 = vmatpush1.msra.mxu0 %v653
        %768 = vmatprep.subr.mxu0 0.0
        %769 = vmatpush1.msra.mxu0 %v656
        %770 = vmatprep.subr.mxu0 0.0
        %771 = vmatpush1.msra.mxu0 %v659
        %772 = vmatprep.subr.mxu0 0.0
        %773 = vmatpush1.msra.mxu0 %v662
        %774 = vmatprep.subr.mxu0 0.0
        %775 = vmatpush1.msra.mxu0 %v665
        %776 = vmatprep.subr.mxu0 0.0
        %777 = vmatpush1.msra.mxu0 %v668
        %778 = vmatprep.subr.mxu0 0.0
        %779 = vmatpush1.msra.mxu0 0.0
        %780 = vmatprep.subr.mxu0 0.0
        %781 = vmatpush1.msra.mxu0 0.0
        %782 = vmatprep.subr.mxu0 0.0
        %783 = vmatpush1.msra.mxu0 0.0
        %784 = vmatprep.subr.mxu0 0.0
        %785 = vmatpush1.msra.mxu0 0.0
        %786 = vmatprep.subr.mxu0 0.0
        %787 = vmatpush1.msra.mxu0 0.0
        %788 = vmatprep.subr.mxu0 0.0
        %789 = vmatpush1.msra.mxu0 0.0
        %790 = vmatprep.subr.mxu0 0.0
        %791 = vmatpush1.msra.mxu0 0.0
        %792 = vmatprep.subr.mxu0 0.0
        %793 = vmatpush1.msra.mxu0 0.0
        %794 = vmatprep.subr.mxu0 0.0
        %795 = vmatpush1.msra.mxu0 0.0
        %796 = vmatprep.subr.mxu0 0.0
        %797 = vmatpush1.msra.mxu0 0.0
        %798 = vmatprep.subr.mxu0 0.0
        %799 = vmatpush1.msra.mxu0 0.0
        %800 = vmatprep.subr.mxu0 0.0
        %801 = vmatpush1.msra.mxu0 0.0
        %802 = vmatprep.subr.mxu0 0.0
        %803 = vmatpush1.msra.mxu0 0.0
        %804 = vmatprep.subr.mxu0 0.0
        %805 = vmatpush1.msra.mxu0 0.0
        %806 = vmatprep.subr.mxu0 0.0
        %807 = vmatpush1.msra.mxu0 0.0
        %808 = vmatprep.subr.mxu0 0.0
        %809 = vmatpush1.msra.mxu0 0.0
        %810 = vmatprep.mubr.f32.mxu0 0.0
        %811 = vmatmul.mubr.f32.gmra.mrb[0].mxu0 %v618
        %v812 = vpop.f32.mrb[0].mxu0
        %v813 = vadd.f32 0.0, %v812
        %v814 = vpop.f32.mrb[0].mxu0
        %815 = vmatprep.mubr.f32.mxu0 0.0
        %816 = vmatmul.mubr.f32.gmra.mrb[0].mxu0 %v619
        %v817 = vpop.f32.mrb[0].mxu0
        %v818 = vadd.f32 0.0, %v817
        %v819 = vpop.f32.mrb[0].mxu0
        %820 = vdwg.mxu0
        %v821 = vadd.f32 %v612, %v736
        %v822 = vadd.f32 %v613, %v738
        %v823 = vadd.f32 %v614, %v813
        %v824 = vadd.f32 %v615, %v742
        %v825 = vadd.f32 %v616, %v744
        %v826 = vadd.f32 %v617, %v818
        %827 = vst [vmem:[%s178] sm:$0xff] %v821
        %828 = vst [vmem:[%s178 + $0x8] sm:$0xff] %v822
        %829 = vst [vmem:[%s178 + $0x10] sm:$0xff] %v823
        %830 = vst [vmem:[%s178 + $0x18] sm:$0xff] %v824
        %831 = vst [vmem:[%s178 + $0x20] sm:$0xff] %v825
        %832 = vst [vmem:[%s178 + $0x28] sm:$0xff] %v826
        %s833 = sand.u32 %s94, 1
        %s834 = scalar_lea.sflag [#allocation4], %s833
        %s835 = sand.u32 %s94, 1
        %s836 = smul.addr %s835, 48
        %s837 = scalar_lea.vmem [#allocation5], %s836
        // Predicated region
        $region37: #{tpu_custom_call.1} parent=31 // pred_check
          %p838 = pneg %p104
        $region38: #{tpu_custom_call.1} parent=31 // pred_check_branch
          %840 = sbr.rel (%p838) target = $region40
        $region39: #{tpu_custom_call.1} parent=31 // pred_region
          %s842 = ssub.s32 768, 768
          %843 = vsyncadd %s834, %s842
          %s844 = smul.addr %s18, 6
          %s845 = smul.addr %s844, 128
          %s846 = scalar_lea.hbm %s3, %s845
          %s847 = sshll.u32 %s837, 4
          %s848 = int_to_ptr.vmem [resolvable:$true] %s847
          %853 = dma.vmem_to_hbm [thread:$0]  %s848, 768, %s846, %s834, 384, 384, 24
        $region40: #{tpu_custom_call.1} parent=31 // pred_fallthru
          _
      $region32: #{tpu_custom_call.1} parent=5 // pred_fallthru
        _
      %p854 = scmp.le.s32.totalorder 2, %s13
      // Predicated region
      $region41: #{tpu_custom_call.1} parent=5 // pred_check
        %p855 = pneg %p854
      $region42: #{tpu_custom_call.1} parent=5 // pred_check_branch
        %857 = sbr.rel (%p855) target = $region44
      $region43: #{tpu_custom_call.1} parent=5 // pred_region
        %s858 = ssub.s32 %s13, 2
        // Predicated region
        $region45: #{tpu_custom_call.1} parent=43 // pred_check
          %p859 = pneg %p110
        $region46: #{tpu_custom_call.1} parent=43 // pred_check_branch
          %861 = sbr.rel (%p859) target = $region48
        $region47: #{tpu_custom_call.1} parent=43 // pred_region
          %s862 = sand.u32 %s95, 1
          %s863 = scalar_lea.sflag [#allocation4], %s862
          %s864 = sand.u32 %s95, 1
          %s865 = smul.addr %s864, 48
          %s866 = scalar_lea.vmem [#allocation5], %s865
          %867 = dma.done %s863, 768
        $region48: #{tpu_custom_call.1} parent=43 // pred_fallthru
          _
      $region44: #{tpu_custom_call.1} parent=5 // pred_fallthru
        _
    $region6: #{tpu_custom_call.1} parent=1 // loop_footer
      %s17 = sadd.s32 1, %s13
    $region7: #{tpu_custom_call.1} parent=1 // loop_footer_branch
      %12 = sbr.rel target = $region3
    $region8: #{tpu_custom_call.1} parent=1 // loop_exit
      _
    %868 = vsyncpa [#allocation3], 1
    %s869 = scalar_lea.sflag [#allocation3], 1
    %870 = vsyncpa %s869, 1
    %871 = vsyncpa [#allocation4], 1
    %s872 = scalar_lea.sflag [#allocation4], 1
    %873 = vsyncpa %s872, 1

</llo_original>
